<compile_context>
chip_gen: v6e
topology: v6e:2x2x1
jax: 0.10.0
libtpu: 0.0.40
codegen_flags: <defaults>
</compile_context>

<pallas_src>
import functools

import jax
import jax.numpy as jnp
from jax.experimental import pallas as pl
from jax.experimental.pallas import tpu as pltpu

GSM_TEMPERATURE = 0.5   # config.gsm_temperature (deterministic, set in-script)
_EPS = 1e-20            # eps inside the inner log, as in the PyTorch reference
_NEG_BIG = -1e9         # padding value for feature axis -> ~zero probability


def _round_up(x, m):
    return ((x + m - 1) // m) * m


def _gumbel_softmax_math(unif, logits_f32, inv_temperature, use_approx_recip):
    """Shared math: Gumbel transform + temperature scale + row softmax (f32)."""
    g = -jnp.log(-jnp.log(unif + _EPS))                 # EUP (log x2)
    h = (g + logits_f32) * inv_temperature              # VPU
    m = jnp.max(h, axis=-1, keepdims=True)              # XLU reduce
    e = jnp.exp(h - m)                                  # EUP
    s = jnp.sum(e, axis=-1, keepdims=True)              # XLU reduce
    if use_approx_recip:
        return e * pl.reciprocal(s, approx=True)        # EUP vrcp (cheap)
    return e / s


def _gsm_kernel_hw_prng(seed_ref, l_ref, o_ref, *, inv_temperature):
    """TPU path: Uniform[0,1) drawn on-chip with the hardware PRNG."""
    # Per-tile seeding keeps draws independent across tiles / megacore cores.
    pltpu.prng_seed(seed_ref[0] + pl.program_id(0))
    bits = pltpu.bitcast(pltpu.prng_random_bits(l_ref.shape), jnp.uint32)
    # Mantissa stuffing: [1, 2) then subtract 1 -> Uniform[0, 1).
    unif = pltpu.bitcast((bits >> 9) | jnp.uint32(0x3F800000), jnp.float32) - 1.0
    p = _gumbel_softmax_math(unif, l_ref[...].astype(jnp.float32),
                             inv_temperature, use_approx_recip=True)
    o_ref[...] = p.astype(o_ref.dtype)


def _gsm_kernel_given_noise(unif_ref, l_ref, o_ref, *, inv_temperature):
    """Fallback path (non-TPU backends): uniforms arrive as a kernel input."""
    p = _gumbel_softmax_math(unif_ref[...].astype(jnp.float32),
                             l_ref[...].astype(jnp.float32),
                             inv_temperature, use_approx_recip=False)
    o_ref[...] = p.astype(o_ref.dtype)


def gumbel_softmax(l, seed, temperature=GSM_TEMPERATURE):
    """GumbelSoftmax forward for a 2-D (batch, features) logits array."""
    B, D = l.shape
    out_dtype = l.dtype
    inv_t = float(1.0 / float(temperature))

    # Lane-dense feature axis (multiple of 128); pad with very negative logits
    # so padded columns get ~zero probability and don't perturb the softmax.
    Dp = _round_up(D, 128)
    # Batch tile: multiple of 8 sublanes, ~2 MiB f32 block, capped at 2048
    # rows.  Per-step grid overhead (~0.35 us) amortizes over the tile while
    # double-buffered in+out + intermediates stay inside default scoped VMEM.
    tile_b = max(8, min(2048, (2 * 1024 * 1024) // (4 * Dp)))
    tile_b = max(8, (tile_b // 8) * 8)
    tile_b = min(tile_b, _round_up(B, 8))
    Bp = _round_up(B, tile_b)

    if (Bp, Dp) != (B, D):
        l_in = jnp.pad(l, ((0, Bp - B), (0, Dp - D)), constant_values=_NEG_BIG)
    else:
        l_in = l

    grid = (Bp // tile_b,)
    block = pl.BlockSpec((tile_b, Dp), lambda i, *_: (i, 0))

    if jax.default_backend() == "tpu":
        kernel = functools.partial(_gsm_kernel_hw_prng, inv_temperature=inv_t)
        seed_arr = jnp.asarray([seed], dtype=jnp.int32)
        out = pl.pallas_call(
            kernel,
            out_shape=jax.ShapeDtypeStruct((Bp, Dp), out_dtype),
            grid_spec=pltpu.PrefetchScalarGridSpec(
                num_scalar_prefetch=1,          # seed lands in SMEM
                grid=grid,
                in_specs=[block],
                out_specs=block,
            ),
            compiler_params=pltpu.CompilerParams(
                dimension_semantics=("parallel",),   # megacore-shardable on v7x
                has_side_effects=True,               # stateful hardware PRNG
            ),
        )(seed_arr, l_in)
    else:
        # TODO(synk): pltpu.prng_seed/prng_random_bits have no CPU lowering, so
        # off-TPU the Uniform[0,1) draw is done with jax.random outside the
        # kernel; Gumbel transform + softmax still run inside the Pallas kernel.
        unif = jax.random.uniform(jax.random.PRNGKey(int(seed)), (Bp, Dp),
                                  dtype=jnp.float32)
        kernel = functools.partial(_gsm_kernel_given_noise, inv_temperature=inv_t)
        out = pl.pallas_call(
            kernel,
            out_shape=jax.ShapeDtypeStruct((Bp, Dp), out_dtype),
            grid_spec=pltpu.PrefetchScalarGridSpec(
                num_scalar_prefetch=0,
                grid=grid,
                in_specs=[block, block],
                out_specs=block,
            ),
            compiler_params=pltpu.CompilerParams(
                dimension_semantics=("parallel",),
            ),
        )(unif, l_in)

    if (Bp, Dp) != (B, D):
        out = out[:B, :D]
    return out


if __name__ == "__main__":
    key = jax.random.PRNGKey(0)
    batch, hidden = 8, 128
    l = jax.random.normal(key, (batch, hidden), dtype=jnp.float32)

    p = gumbel_softmax(l, seed=0, temperature=GSM_TEMPERATURE)
    p = jax.block_until_ready(p)

    # Sanity checks: valid probability rows.
    assert p.shape == (batch, hidden)
    assert bool(jnp.all(jnp.isfinite(p)))
    assert bool(jnp.all(p >= 0.0))
    row_sums = jnp.sum(p, axis=-1)
    assert bool(jnp.all(jnp.abs(row_sums - 1.0) < 1e-2))

    print("KERNEL_OK")
</pallas_src>

<mosaic_0001>
module attributes {stable_mosaic.version = 11 : i64} {
  func.func @_gsm_kernel_given_noise(%arg0: i32, %arg1: memref<8x128xf32, #tpu.memory_space<vmem>>, %arg2: memref<8x128xf32, #tpu.memory_space<vmem>>, %arg3: memref<8x128xf32, #tpu.memory_space<vmem>>) attributes {dimension_semantics = [#tpu.dimension_semantics<parallel>], iteration_bounds = array<i64: 1>, scalar_prefetch = 0 : i64, scratch_operands = 0 : i64, tpu.core_type = #tpu.core_type<tc>, window_params = [{transform_indices = @transform_0, window_bounds = array<i64: 8, 128>}, {transform_indices = @transform_1, window_bounds = array<i64: 8, 128>}, {transform_indices = @transform_2, window_bounds = array<i64: 8, 128>}]} {
    %c0 = arith.constant 0 : index
    %c0_0 = arith.constant 0 : index
    %0 = vector.load %arg1[%c0, %c0_0] : memref<8x128xf32, #tpu.memory_space<vmem>>, vector<8x128xf32>
    %c0_1 = arith.constant 0 : index
    %c0_2 = arith.constant 0 : index
    %1 = vector.load %arg2[%c0_1, %c0_2] : memref<8x128xf32, #tpu.memory_space<vmem>>, vector<8x128xf32>
    %cst = arith.constant 9.99999968E-21 : f32
    %2 = vector.broadcast %cst : f32 to vector<8x128xf32>
    %3 = arith.addf %0, %2 : vector<8x128xf32>
    %4 = math.log %3 : vector<8x128xf32>
    %cst_3 = arith.constant 0.000000e+00 : f32
    %5 = vector.broadcast %cst_3 : f32 to vector<8x128xf32>
    %6 = arith.subf %5, %4 : vector<8x128xf32>
    %7 = math.log %6 : vector<8x128xf32>
    %cst_4 = arith.constant 0.000000e+00 : f32
    %8 = vector.broadcast %cst_4 : f32 to vector<8x128xf32>
    %9 = arith.subf %8, %7 : vector<8x128xf32>
    %10 = arith.addf %9, %1 : vector<8x128xf32>
    %cst_5 = arith.constant 2.000000e+00 : f32
    %11 = vector.broadcast %cst_5 : f32 to vector<8x128xf32>
    %12 = arith.mulf %10, %11 : vector<8x128xf32>
    %cst_6 = arith.constant dense<0xFF800000> : vector<8xf32>
    %13 = vector.multi_reduction <maximumf>, %12, %cst_6 [1] : vector<8x128xf32> to vector<8xf32>
    %14 = vector.shape_cast %13 : vector<8xf32> to vector<8x1xf32>
    %15 = vector.broadcast %14 : vector<8x1xf32> to vector<8x128xf32>
    %16 = arith.subf %12, %15 : vector<8x128xf32>
    %17 = math.exp %16 : vector<8x128xf32>
    %cst_7 = arith.constant dense<0.000000e+00> : vector<8xf32>
    %18 = vector.multi_reduction <add>, %17, %cst_7 [1] : vector<8x128xf32> to vector<8xf32>
    %19 = vector.shape_cast %18 : vector<8xf32> to vector<8x1xf32>
    %20 = vector.broadcast %19 : vector<8x1xf32> to vector<8x128xf32>
    %21 = arith.divf %17, %20 : vector<8x128xf32>
    %c0_8 = arith.constant 0 : index
    %c0_9 = arith.constant 0 : index
    %22 = vector.load %arg3[%c0_8, %c0_9] : memref<8x128xf32, #tpu.memory_space<vmem>>, vector<8x128xf32>
    tpu.vector_store %arg3[%c0_8, %c0_9], %21 {strides = array<i32>} : memref<8x128xf32, #tpu.memory_space<vmem>>, vector<8x128xf32>,
    return
  }
  func.func @transform_0(%arg0: i32) -> (i32, i32) {
    %c0_i32 = arith.constant 0 : i32
    %c0_i32_0 = arith.constant 0 : i32
    return %arg0, %c0_i32 : i32, i32
  }
  func.func @transform_1(%arg0: i32) -> (i32, i32) {
    %c0_i32 = arith.constant 0 : i32
    %c0_i32_0 = arith.constant 0 : i32
    return %arg0, %c0_i32 : i32, i32
  }
  func.func @transform_2(%arg0: i32) -> (i32, i32) {
    %c0_i32 = arith.constant 0 : i32
    %c0_i32_0 = arith.constant 0 : i32
    return %arg0, %c0_i32 : i32, i32
  }
}

</mosaic_0001>

<llo_original>
// kernel: tpu_custom_call.1
$region0: #{tpu_custom_call.1}
  #allocation0 [shape = 'u32[]', space=smem, size = 0x4, offset = 0x4, fixed_abs, tag = 'smem constant byte address 0x4 - core index']
  #allocation1 [shape = 'u32[144,128]{1,0:T(1,128)}', space=vmem, size = 0x12000, scoped, tag = 'internal scratch']
  %s0 = inlined_call_operand.hbm [shape: f32[8,128], index: 0, kind: input, shape index: {}]
  %s1 = inlined_call_operand.hbm [shape: f32[8,128], index: 1, kind: input, shape index: {}]
  %s2 = inlined_call_operand.hbm [shape: f32[8,128], index: 2, kind: output, shape index: {}]
  %s3 = sld [smem:[#allocation0]]
  $region26: #{tpu_custom_call.1} parent=0
    _
  %s5 = ssub.s32 1, %s3
  %s6 = scalar_select 0, %s5, %s3
  $region1: #{tpu_custom_call.1} parent=0
    #allocation2 [shape = 'u8[4096]{0}', space=vmem, size = 0x1000, scoped, tag = 'input window, operand 0, single buffered']
    #allocation3 [shape = 's32[1]{0}', space=sflag, size = 0x4, scoped, tag = 'scoped memory for tpu_custom_call.1']
    #allocation4 [shape = 's32[1]{0}', space=sflag, size = 0x4, scoped, tag = 'scoped memory for tpu_custom_call.1']
    #allocation5 [shape = 'u8[4096]{0}', space=vmem, size = 0x1000, scoped, tag = 'input window, operand 1, single buffered']
    #allocation6 [shape = 's32[1]{0}', space=sflag, size = 0x4, scoped, tag = 'scoped memory for tpu_custom_call.1']
    #allocation7 [shape = 'u8[4096]{0}', space=vmem, size = 0x1000, scoped, tag = 'output window, operand 0, single buffered']
    %7 = vsyncpa [#allocation3], 0
    %8 = vsyncpa [#allocation6], 0
    %9 = vsyncpa [#allocation4], 0
    // Predicated region
    $region2: #{tpu_custom_call.1} parent=1 // pred_check
      _
    $region3: #{tpu_custom_call.1} parent=1 // pred_check_branch
      %11 = sbr.rel (0) target = $region5
    $region4: #{tpu_custom_call.1} parent=1 // pred_region
      %s13 = ssub.s32 128, 128
      %14 = vsyncadd [#allocation3], %s13
      %s16 = sshll.u32 [#allocation2], 4
      %s17 = int_to_ptr.vmem [resolvable:$true] %s16
      %19 = dma.hbm_to_vmem [thread:$0]  %s0, 128, %s17, [#allocation3]
    $region5: #{tpu_custom_call.1} parent=1 // pred_fallthru
      _
    // Predicated region
    $region6: #{tpu_custom_call.1} parent=1 // pred_check
      _
    $region7: #{tpu_custom_call.1} parent=1 // pred_check_branch
      %21 = sbr.rel (0) target = $region9
    $region8: #{tpu_custom_call.1} parent=1 // pred_region
      %s23 = ssub.s32 128, 128
      %24 = vsyncadd [#allocation6], %s23
      %s26 = sshll.u32 [#allocation5], 4
      %s27 = int_to_ptr.vmem [resolvable:$true] %s26
      %29 = dma.hbm_to_vmem [thread:$0]  %s1, 128, %s27, [#allocation6]
    $region9: #{tpu_custom_call.1} parent=1 // pred_fallthru
      _
    // Predicated region
    $region10: #{tpu_custom_call.1} parent=1 // pred_check
      _
    $region11: #{tpu_custom_call.1} parent=1 // pred_check_branch
      %31 = sbr.rel (0) target = $region13
    $region12: #{tpu_custom_call.1} parent=1 // pred_region
      %32 = dma.done [#allocation3], 128
    $region13: #{tpu_custom_call.1} parent=1 // pred_fallthru
      _
    // Predicated region
    $region14: #{tpu_custom_call.1} parent=1 // pred_check
      _
    $region15: #{tpu_custom_call.1} parent=1 // pred_check_branch
      %34 = sbr.rel (0) target = $region17
    $region16: #{tpu_custom_call.1} parent=1 // pred_region
      %35 = dma.done [#allocation6], 128
    $region17: #{tpu_custom_call.1} parent=1 // pred_fallthru
      _
    %v36 = vld [vmem:[#allocation2] sm:$0xff]
    %v37 = vld [vmem:[#allocation5] sm:$0xff]
    %v38 = vadd.f32 %v36, 1e-20
    %v39 = vlog2.pop %v38
    %v40 = vmul.f32 %v39, 0.6931472
    %v41 = vsub.f32 0.0, %v40
    %v42 = vlog2.pop %v41
    %v43 = vmul.f32 %v42, 0.6931472
    %v44 = vsub.f32 0.0, %v43
    %v45 = vadd.f32 %v44, %v37
    %v46 = vmul.f32 %v45, 2.0
    %47 = vmax.xlane.f32.xlu0 %v46
    %v48 = vpop.xlane.xlu0 %47
    %v49 = vsub.f32 %v46, %v48
    %v50 = vmul.f32 %v49, 1.442695
    %v51 = vpow.pop %v50
    %52 = vadd.xlane.f32.xlu0 %v51
    %v53 = vpop.xlane.xlu0 %52
    %v54 = vrcp.pop %v53
    %v55 = vmul.f32 %v51, %v54
    %56 = vst [vmem:[#allocation7] sm:$0xff] %v55
    // Predicated region
    $region18: #{tpu_custom_call.1} parent=1 // pred_check
      _
    $region19: #{tpu_custom_call.1} parent=1 // pred_check_branch
      %58 = sbr.rel (0) target = $region21
    $region20: #{tpu_custom_call.1} parent=1 // pred_region
      %s60 = ssub.s32 128, 128
      %61 = vsyncadd [#allocation4], %s60
      %s63 = sshll.u32 [#allocation7], 4
      %s64 = int_to_ptr.vmem [resolvable:$true] %s63
      %66 = dma.vmem_to_hbm [thread:$0]  %s64, 128, %s2, [#allocation4]
    $region21: #{tpu_custom_call.1} parent=1 // pred_fallthru
      _
    // Predicated region
    $region22: #{tpu_custom_call.1} parent=1 // pred_check
      _
    $region23: #{tpu_custom_call.1} parent=1 // pred_check_branch
      %68 = sbr.rel (0) target = $region25
    $region24: #{tpu_custom_call.1} parent=1 // pred_region
      %69 = dma.done [#allocation4], 128
    $region25: #{tpu_custom_call.1} parent=1 // pred_fallthru
      _
    %70 = vsyncpa [#allocation3], 1
    %71 = vsyncpa [#allocation6], 1
    %72 = vsyncpa [#allocation4], 1

</llo_original>
